<compile_context>
chip_gen: v7x
topology: tpu7x:2x2x1
jax: 0.10.0
libtpu: 0.0.40
codegen_flags: <defaults>
</compile_context>

<pallas_src>
import functools

import jax
import jax.numpy as jnp
from jax.experimental import pallas as pl
from jax.experimental.pallas import tpu as pltpu


_VMEM_SPEC = pl.BlockSpec(memory_space=pltpu.MemorySpace.VMEM)


def _round_up(x, m):
    return ((x + m - 1) // m) * m


# ---------------------------------------------------------------------------
# Fused kernel: n_layers LSTM cells + Linear head, everything VMEM-resident.
# ---------------------------------------------------------------------------
def _decoder_step_kernel(x_ref, h_ref, c_ref, w_ref, b_ref, wout_ref, bout_ref,
                         pred_ref, h_out_ref, c_out_ref, *, n_layers, hp, xp):
    """Shapes (all padded, lane dims multiples of 128):
      x_ref    : (B, xp)               f32   layer-0 input
      h_ref    : (n_layers, B, hp)     f32
      c_ref    : (n_layers, B, hp)     f32
      w_ref    : (n_layers, xp+hp, 4*hp) bf16  [W_ih ; W_hh] concatenated
      b_ref    : (n_layers, 1, 4*hp)   f32   (b_ih + b_hh)
      wout_ref : (hp, op)              bf16
      bout_ref : (1, op)               f32
      pred_ref : (B, op)               f32
      h_out_ref, c_out_ref : (n_layers, B, hp) f32
    Gate order i, f, g, o matches PyTorch; each gate occupies its own
    128-aligned lane slab of the 4*hp gate axis.
    """
    x = x_ref[...]                                     # (B, xp) f32
    for layer in range(n_layers):                      # static unroll
        h = h_ref[layer]                               # (B, hp)
        c = c_ref[layer]                               # (B, hp)
        wl = w_ref[layer]                              # (xp+hp, 4*hp) bf16
        xh = jnp.concatenate([x, h], axis=-1).astype(wl.dtype)   # (B, xp+hp)
        gates = (jnp.dot(xh, wl, preferred_element_type=jnp.float32)
                 + b_ref[layer])                       # (B, 4*hp) f32
        i_g = jax.nn.sigmoid(gates[:, 0 * hp:1 * hp])
        f_g = jax.nn.sigmoid(gates[:, 1 * hp:2 * hp])
        g_g = jnp.tanh(gates[:, 2 * hp:3 * hp])
        o_g = jax.nn.sigmoid(gates[:, 3 * hp:4 * hp])
        c_new = f_g * c + i_g * g_g
        h_new = o_g * jnp.tanh(c_new)
        c_out_ref[layer] = c_new
        h_out_ref[layer] = h_new
        x = h_new
        if xp != hp:  # only if input_dim pad differs from hidden pad
            x = jnp.concatenate(
                [x, jnp.zeros((x.shape[0], xp - hp), jnp.float32)], axis=-1)

    wo = wout_ref[...]
    pred_ref[...] = (jnp.dot(x[:, :hp].astype(wo.dtype), wo,
                             preferred_element_type=jnp.float32)
                     + bout_ref[...])


# ---------------------------------------------------------------------------
# Wrapper: pad to kernel layout, single pallas_call, slice padding off.
# ---------------------------------------------------------------------------
def decoder_forward(inp, hidden, cell, params):
    """inp: (B, input_dim); hidden/cell: (n_layers, B, hid_dim).
    Returns (prediction (1, B, output_dim), hidden', cell')."""
    dims = params["dims"]
    xp, hp, op = dims["xp"], dims["hp"], dims["op"]
    n_layers = dims["n_layers"]
    B = inp.shape[0]

    x_p = jnp.pad(inp.astype(jnp.float32),
                  ((0, 0), (0, xp - dims["input_dim"])))
    pad_h = ((0, 0), (0, 0), (0, hp - dims["hid_dim"]))
    h_p = jnp.pad(hidden.astype(jnp.float32), pad_h)
    c_p = jnp.pad(cell.astype(jnp.float32), pad_h)

    kernel = functools.partial(_decoder_step_kernel,
                               n_layers=n_layers, hp=hp, xp=xp)
    pred_p, h_out_p, c_out_p = pl.pallas_call(
        kernel,
        out_shape=(jax.ShapeDtypeStruct((B, op), jnp.float32),
                   jax.ShapeDtypeStruct((n_layers, B, hp), jnp.float32),
                   jax.ShapeDtypeStruct((n_layers, B, hp), jnp.float32)),
        in_specs=[_VMEM_SPEC] * 7,
        out_specs=(_VMEM_SPEC, _VMEM_SPEC, _VMEM_SPEC),
    )(x_p, h_p, c_p, params["w"], params["b"], params["w_out"], params["b_out"])

    pred = pred_p[:, :dims["output_dim"]]
    h_new = h_out_p[..., :dims["hid_dim"]]
    c_new = c_out_p[..., :dims["hid_dim"]]
    return pred[None], h_new, c_new


# Pure-JAX reference (uses the same bf16-rounded weight values).
def decoder_forward_ref(inp, hidden, cell, params):
    ref, dims = params["ref"], params["dims"]
    H = dims["hid_dim"]
    x = inp
    new_h, new_c = [], []
    for layer in range(dims["n_layers"]):
        gates = (x @ ref["w_ih"][layer] + hidden[layer] @ ref["w_hh"][layer]
                 + ref["b"][layer])
        i_g = jax.nn.sigmoid(gates[:, :H])
        f_g = jax.nn.sigmoid(gates[:, H:2 * H])
        g_g = jnp.tanh(gates[:, 2 * H:3 * H])
        o_g = jax.nn.sigmoid(gates[:, 3 * H:])
        c_l = f_g * cell[layer] + i_g * g_g
        h_l = o_g * jnp.tanh(c_l)
        new_h.append(h_l)
        new_c.append(c_l)
        x = h_l
    pred = x @ ref["w_out"] + ref["b_out"]
    return pred[None], jnp.stack(new_h), jnp.stack(new_c)


# ---------------------------------------------------------------------------
# Parameter init: PyTorch-style logical weights, packed into the fused,
# 128-lane-padded, bf16 kernel layout.
# ---------------------------------------------------------------------------
def _pack_layer(w_ih, w_hh, b, d_in, H, xp, hp):
    cp, gp = xp + hp, 4 * hp
    w = jnp.zeros((cp, gp), jnp.float32)
    bp = jnp.zeros((1, gp), jnp.float32)
    for g in range(4):  # place each gate in its own 128-aligned slab
        w = w.at[:d_in, g * hp:g * hp + H].set(w_ih[:, g * H:(g + 1) * H])
        w = w.at[xp:xp + H, g * hp:g * hp + H].set(w_hh[:, g * H:(g + 1) * H])
        bp = bp.at[:, g * hp:g * hp + H].set(b[:, g * H:(g + 1) * H])
    return w, bp


def init_params(key, input_dim, hid_dim, output_dim, n_layers,
                weight_dtype=jnp.bfloat16):
    xp = _round_up(max(input_dim, hid_dim), 128)
    hp = _round_up(hid_dim, 128)
    op = _round_up(output_dim, 128)
    bound = 1.0 / (hid_dim ** 0.5)

    ref = {"w_ih": [], "w_hh": [], "b": []}
    w_packed, b_packed = [], []
    for layer in range(n_layers):
        d_in = input_dim if layer == 0 else hid_dim
        key, k1, k2, k3, k4 = jax.random.split(key, 5)
        # Stored transposed relative to PyTorch (kernel does x @ W).
        w_ih = jax.random.uniform(k1, (d_in, 4 * hid_dim), jnp.float32,
                                  -bound, bound)
        w_hh = jax.random.uniform(k2, (hid_dim, 4 * hid_dim), jnp.float32,
                                  -bound, bound)
        b_ih = jax.random.uniform(k3, (1, 4 * hid_dim), jnp.float32,
                                  -bound, bound)
        b_hh = jax.random.uniform(k4, (1, 4 * hid_dim), jnp.float32,
                                  -bound, bound)
        # Quantize weights to the kernel dtype so kernel and reference use
        # identical values; biases stay f32.
        w_ih = w_ih.astype(weight_dtype).astype(jnp.float32)
        w_hh = w_hh.astype(weight_dtype).astype(jnp.float32)
        b = b_ih + b_hh
        ref["w_ih"].append(w_ih)
        ref["w_hh"].append(w_hh)
        ref["b"].append(b)
        wp, bp = _pack_layer(w_ih, w_hh, b, d_in, hid_dim, xp, hp)
        w_packed.append(wp)
        b_packed.append(bp)

    key, k5, k6 = jax.random.split(key, 3)
    w_out = jax.random.uniform(k5, (hid_dim, output_dim), jnp.float32,
                               -bound, bound)
    b_out = jax.random.uniform(k6, (1, output_dim), jnp.float32,
                               -bound, bound)
    w_out = w_out.astype(weight_dtype).astype(jnp.float32)
    ref["w_out"] = w_out
    ref["b_out"] = b_out

    w_out_p = jnp.zeros((hp, op), jnp.float32).at[:hid_dim, :output_dim].set(w_out)
    b_out_p = jnp.zeros((1, op), jnp.float32).at[:, :output_dim].set(b_out)

    return {
        "w": jnp.stack(w_packed).astype(weight_dtype),   # (L, xp+hp, 4*hp)
        "b": jnp.stack(b_packed),                         # (L, 1, 4*hp) f32
        "w_out": w_out_p.astype(weight_dtype),            # (hp, op)
        "b_out": b_out_p,                                  # (1, op) f32
        "dims": dict(input_dim=input_dim, hid_dim=hid_dim,
                     output_dim=output_dim, n_layers=n_layers,
                     xp=xp, hp=hp, op=op),
        "ref": ref,
    }


if __name__ == "__main__":
    # Small shapes consistent with the module.
    INPUT_DIM, HID_DIM, OUTPUT_DIM, N_LAYERS, BATCH = 32, 32, 16, 2, 8

    key = jax.random.PRNGKey(0)
    kp, kx, kh, kc = jax.random.split(key, 4)
    params = init_params(kp, INPUT_DIM, HID_DIM, OUTPUT_DIM, N_LAYERS)

    inp = jax.random.normal(kx, (BATCH, INPUT_DIM), jnp.float32)
    hidden = jax.random.normal(kh, (N_LAYERS, BATCH, HID_DIM), jnp.float32)
    cell = jax.random.normal(kc, (N_LAYERS, BATCH, HID_DIM), jnp.float32)

    pred, h_new, c_new = decoder_forward(inp, hidden, cell, params)
    jax.block_until_ready((pred, h_new, c_new))

    pred_r, h_r, c_r = decoder_forward_ref(inp, hidden, cell, params)
    assert pred.shape == (1, BATCH, OUTPUT_DIM)
    assert h_new.shape == (N_LAYERS, BATCH, HID_DIM)
    assert c_new.shape == (N_LAYERS, BATCH, HID_DIM)
    # bf16 activation cast at the matmul => relaxed (but tight for bf16) tols.
    assert jnp.allclose(pred, pred_r, atol=2e-2, rtol=2e-2)
    assert jnp.allclose(h_new, h_r, atol=2e-2, rtol=2e-2)
    assert jnp.allclose(c_new, c_r, atol=2e-2, rtol=2e-2)

    print("KERNEL_OK")
</pallas_src>

<mosaic_0001>
module attributes {stable_mosaic.version = 11 : i64} {
  func.func @_decoder_step_kernel(%arg0: memref<8x128xf32, #tpu.memory_space<vmem>>, %arg1: memref<2x8x128xf32, #tpu.memory_space<vmem>>, %arg2: memref<2x8x128xf32, #tpu.memory_space<vmem>>, %arg3: memref<2x256x512xbf16, #tpu.memory_space<vmem>>, %arg4: memref<2x1x512xf32, #tpu.memory_space<vmem>>, %arg5: memref<128x128xbf16, #tpu.memory_space<vmem>>, %arg6: memref<1x128xf32, #tpu.memory_space<vmem>>, %arg7: memref<8x128xf32, #tpu.memory_space<vmem>>, %arg8: memref<2x8x128xf32, #tpu.memory_space<vmem>>, %arg9: memref<2x8x128xf32, #tpu.memory_space<vmem>>) attributes {dimension_semantics = [], scalar_prefetch = 0 : i64, scratch_operands = 0 : i64, tpu.core_type = #tpu.core_type<tc>} {
    %c0 = arith.constant 0 : index
    %c0_0 = arith.constant 0 : index
    %0 = vector.load %arg0[%c0, %c0_0] : memref<8x128xf32, #tpu.memory_space<vmem>>, vector<8x128xf32>
    %c0_1 = arith.constant 0 : index
    %c0_2 = arith.constant 0 : index
    %c0_3 = arith.constant 0 : index
    %1 = vector.load %arg1[%c0_1, %c0_2, %c0_3] : memref<2x8x128xf32, #tpu.memory_space<vmem>>, vector<1x8x128xf32>
    %2 = vector.shape_cast %1 : vector<1x8x128xf32> to vector<8x128xf32>
    %c0_4 = arith.constant 0 : index
    %c0_5 = arith.constant 0 : index
    %c0_6 = arith.constant 0 : index
    %3 = vector.load %arg2[%c0_4, %c0_5, %c0_6] : memref<2x8x128xf32, #tpu.memory_space<vmem>>, vector<1x8x128xf32>
    %4 = vector.shape_cast %3 : vector<1x8x128xf32> to vector<8x128xf32>
    %c0_7 = arith.constant 0 : index
    %c0_8 = arith.constant 0 : index
    %c0_9 = arith.constant 0 : index
    %5 = vector.load %arg3[%c0_7, %c0_8, %c0_9] : memref<2x256x512xbf16, #tpu.memory_space<vmem>>, vector<1x256x512xbf16>
    %6 = vector.shape_cast %5 : vector<1x256x512xbf16> to vector<256x512xbf16>
    %7 = tpu.concatenate %0, %2 in 1 : vector<8x128xf32>, vector<8x128xf32> -> vector<8x256xf32>
    %8 = arith.truncf %7 : vector<8x256xf32> to vector<8x256xbf16>
    %cst = arith.constant dense<0.000000e+00> : vector<8x512xf32>
    %9 = tpu.matmul %8, %6, %cst {dimension_numbers = #tpu.dot_dimension_numbers<[1], [0], [0], [1], [0, 0, 1, 1], [], []>} : vector<8x256xbf16>, vector<256x512xbf16>, vector<8x512xf32> -> vector<8x512xf32>
    %c0_10 = arith.constant 0 : index
    %c0_11 = arith.constant 0 : index
    %c0_12 = arith.constant 0 : index
    %10 = vector.load %arg4[%c0_10, %c0_11, %c0_12] : memref<2x1x512xf32, #tpu.memory_space<vmem>>, vector<1x1x512xf32>
    %11 = vector.shape_cast %10 : vector<1x1x512xf32> to vector<1x512xf32>
    %12 = vector.broadcast %11 : vector<1x512xf32> to vector<8x512xf32>
    %13 = arith.addf %9, %12 : vector<8x512xf32>
    %14 = vector.extract_strided_slice %13 {offsets = [0, 0], sizes = [8, 128], strides = [1, 1]} : vector<8x512xf32> to vector<8x128xf32>
    %15 = arith.negf %14 : vector<8x128xf32>
    %16 = math.exp %15 : vector<8x128xf32>
    %cst_13 = arith.constant 1.000000e+00 : f32
    %17 = vector.broadcast %cst_13 : f32 to vector<8x128xf32>
    %18 = arith.addf %17, %16 : vector<8x128xf32>
    %19 = arith.divf %17, %18 : vector<8x128xf32>
    %20 = vector.extract_strided_slice %13 {offsets = [0, 128], sizes = [8, 128], strides = [1, 1]} : vector<8x512xf32> to vector<8x128xf32>
    %21 = arith.negf %20 : vector<8x128xf32>
    %22 = math.exp %21 : vector<8x128xf32>
    %cst_14 = arith.constant 1.000000e+00 : f32
    %23 = vector.broadcast %cst_14 : f32 to vector<8x128xf32>
    %24 = arith.addf %23, %22 : vector<8x128xf32>
    %25 = arith.divf %23, %24 : vector<8x128xf32>
    %26 = vector.extract_strided_slice %13 {offsets = [0, 256], sizes = [8, 128], strides = [1, 1]} : vector<8x512xf32> to vector<8x128xf32>
    %27 = math.tanh %26 : vector<8x128xf32>
    %28 = vector.extract_strided_slice %13 {offsets = [0, 384], sizes = [8, 128], strides = [1, 1]} : vector<8x512xf32> to vector<8x128xf32>
    %29 = arith.negf %28 : vector<8x128xf32>
    %30 = math.exp %29 : vector<8x128xf32>
    %cst_15 = arith.constant 1.000000e+00 : f32
    %31 = vector.broadcast %cst_15 : f32 to vector<8x128xf32>
    %32 = arith.addf %31, %30 : vector<8x128xf32>
    %33 = arith.divf %31, %32 : vector<8x128xf32>
    %34 = arith.mulf %25, %4 : vector<8x128xf32>
    %35 = arith.mulf %19, %27 : vector<8x128xf32>
    %36 = arith.addf %34, %35 : vector<8x128xf32>
    %37 = math.tanh %36 : vector<8x128xf32>
    %38 = arith.mulf %33, %37 : vector<8x128xf32>
    %c0_16 = arith.constant 0 : index
    %c0_17 = arith.constant 0 : index
    %c0_18 = arith.constant 0 : index
    %39 = vector.load %arg9[%c0_16, %c0_17, %c0_18] : memref<2x8x128xf32, #tpu.memory_space<vmem>>, vector<1x8x128xf32>
    %40 = vector.shape_cast %39 : vector<1x8x128xf32> to vector<8x128xf32>
    %41 = vector.shape_cast %36 : vector<8x128xf32> to vector<1x8x128xf32>
    tpu.vector_store %arg9[%c0_16, %c0_17, %c0_18], %41 {strides = array<i32>} : memref<2x8x128xf32, #tpu.memory_space<vmem>>, vector<1x8x128xf32>,
    %c0_19 = arith.constant 0 : index
    %c0_20 = arith.constant 0 : index
    %c0_21 = arith.constant 0 : index
    %42 = vector.load %arg8[%c0_19, %c0_20, %c0_21] : memref<2x8x128xf32, #tpu.memory_space<vmem>>, vector<1x8x128xf32>
    %43 = vector.shape_cast %42 : vector<1x8x128xf32> to vector<8x128xf32>
    %44 = vector.shape_cast %38 : vector<8x128xf32> to vector<1x8x128xf32>
    tpu.vector_store %arg8[%c0_19, %c0_20, %c0_21], %44 {strides = array<i32>} : memref<2x8x128xf32, #tpu.memory_space<vmem>>, vector<1x8x128xf32>,
    %c1 = arith.constant 1 : index
    %c0_22 = arith.constant 0 : index
    %c0_23 = arith.constant 0 : index
    %45 = vector.load %arg1[%c1, %c0_22, %c0_23] : memref<2x8x128xf32, #tpu.memory_space<vmem>>, vector<1x8x128xf32>
    %46 = vector.shape_cast %45 : vector<1x8x128xf32> to vector<8x128xf32>
    %c1_24 = arith.constant 1 : index
    %c0_25 = arith.constant 0 : index
    %c0_26 = arith.constant 0 : index
    %47 = vector.load %arg2[%c1_24, %c0_25, %c0_26] : memref<2x8x128xf32, #tpu.memory_space<vmem>>, vector<1x8x128xf32>
    %48 = vector.shape_cast %47 : vector<1x8x128xf32> to vector<8x128xf32>
    %c1_27 = arith.constant 1 : index
    %c0_28 = arith.constant 0 : index
    %c0_29 = arith.constant 0 : index
    %49 = vector.load %arg3[%c1_27, %c0_28, %c0_29] : memref<2x256x512xbf16, #tpu.memory_space<vmem>>, vector<1x256x512xbf16>
    %50 = vector.shape_cast %49 : vector<1x256x512xbf16> to vector<256x512xbf16>
    %51 = tpu.concatenate %38, %46 in 1 : vector<8x128xf32>, vector<8x128xf32> -> vector<8x256xf32>
    %52 = arith.truncf %51 : vector<8x256xf32> to vector<8x256xbf16>
    %cst_30 = arith.constant dense<0.000000e+00> : vector<8x512xf32>
    %53 = tpu.matmul %52, %50, %cst_30 {dimension_numbers = #tpu.dot_dimension_numbers<[1], [0], [0], [1], [0, 0, 1, 1], [], []>} : vector<8x256xbf16>, vector<256x512xbf16>, vector<8x512xf32> -> vector<8x512xf32>
    %c1_31 = arith.constant 1 : index
    %c0_32 = arith.constant 0 : index
    %c0_33 = arith.constant 0 : index
    %54 = vector.load %arg4[%c1_31, %c0_32, %c0_33] : memref<2x1x512xf32, #tpu.memory_space<vmem>>, vector<1x1x512xf32>
    %55 = vector.shape_cast %54 : vector<1x1x512xf32> to vector<1x512xf32>
    %56 = vector.broadcast %55 : vector<1x512xf32> to vector<8x512xf32>
    %57 = arith.addf %53, %56 : vector<8x512xf32>
    %58 = vector.extract_strided_slice %57 {offsets = [0, 0], sizes = [8, 128], strides = [1, 1]} : vector<8x512xf32> to vector<8x128xf32>
    %59 = arith.negf %58 : vector<8x128xf32>
    %60 = math.exp %59 : vector<8x128xf32>
    %cst_34 = arith.constant 1.000000e+00 : f32
    %61 = vector.broadcast %cst_34 : f32 to vector<8x128xf32>
    %62 = arith.addf %61, %60 : vector<8x128xf32>
    %63 = arith.divf %61, %62 : vector<8x128xf32>
    %64 = vector.extract_strided_slice %57 {offsets = [0, 128], sizes = [8, 128], strides = [1, 1]} : vector<8x512xf32> to vector<8x128xf32>
    %65 = arith.negf %64 : vector<8x128xf32>
    %66 = math.exp %65 : vector<8x128xf32>
    %cst_35 = arith.constant 1.000000e+00 : f32
    %67 = vector.broadcast %cst_35 : f32 to vector<8x128xf32>
    %68 = arith.addf %67, %66 : vector<8x128xf32>
    %69 = arith.divf %67, %68 : vector<8x128xf32>
    %70 = vector.extract_strided_slice %57 {offsets = [0, 256], sizes = [8, 128], strides = [1, 1]} : vector<8x512xf32> to vector<8x128xf32>
    %71 = math.tanh %70 : vector<8x128xf32>
    %72 = vector.extract_strided_slice %57 {offsets = [0, 384], sizes = [8, 128], strides = [1, 1]} : vector<8x512xf32> to vector<8x128xf32>
    %73 = arith.negf %72 : vector<8x128xf32>
    %74 = math.exp %73 : vector<8x128xf32>
    %cst_36 = arith.constant 1.000000e+00 : f32
    %75 = vector.broadcast %cst_36 : f32 to vector<8x128xf32>
    %76 = arith.addf %75, %74 : vector<8x128xf32>
    %77 = arith.divf %75, %76 : vector<8x128xf32>
    %78 = arith.mulf %69, %48 : vector<8x128xf32>
    %79 = arith.mulf %63, %71 : vector<8x128xf32>
    %80 = arith.addf %78, %79 : vector<8x128xf32>
    %81 = math.tanh %80 : vector<8x128xf32>
    %82 = arith.mulf %77, %81 : vector<8x128xf32>
    %c1_37 = arith.constant 1 : index
    %c0_38 = arith.constant 0 : index
    %c0_39 = arith.constant 0 : index
    %83 = vector.load %arg9[%c1_37, %c0_38, %c0_39] : memref<2x8x128xf32, #tpu.memory_space<vmem>>, vector<1x8x128xf32>
    %84 = vector.shape_cast %83 : vector<1x8x128xf32> to vector<8x128xf32>
    %85 = vector.shape_cast %80 : vector<8x128xf32> to vector<1x8x128xf32>
    tpu.vector_store %arg9[%c1_37, %c0_38, %c0_39], %85 {strides = array<i32>} : memref<2x8x128xf32, #tpu.memory_space<vmem>>, vector<1x8x128xf32>,
    %c1_40 = arith.constant 1 : index
    %c0_41 = arith.constant 0 : index
    %c0_42 = arith.constant 0 : index
    %86 = vector.load %arg8[%c1_40, %c0_41, %c0_42] : memref<2x8x128xf32, #tpu.memory_space<vmem>>, vector<1x8x128xf32>
    %87 = vector.shape_cast %86 : vector<1x8x128xf32> to vector<8x128xf32>
    %88 = vector.shape_cast %82 : vector<8x128xf32> to vector<1x8x128xf32>
    tpu.vector_store %arg8[%c1_40, %c0_41, %c0_42], %88 {strides = array<i32>} : memref<2x8x128xf32, #tpu.memory_space<vmem>>, vector<1x8x128xf32>,
    %c0_43 = arith.constant 0 : index
    %c0_44 = arith.constant 0 : index
    %89 = vector.load %arg5[%c0_43, %c0_44] : memref<128x128xbf16, #tpu.memory_space<vmem>>, vector<128x128xbf16>
    %90 = arith.truncf %82 : vector<8x128xf32> to vector<8x128xbf16>
    %cst_45 = arith.constant dense<0.000000e+00> : vector<8x128xf32>
    %91 = tpu.matmul %90, %89, %cst_45 {dimension_numbers = #tpu.dot_dimension_numbers<[1], [0], [0], [1], [0, 0, 1, 1], [], []>} : vector<8x128xbf16>, vector<128x128xbf16>, vector<8x128xf32> -> vector<8x128xf32>
    %c0_46 = arith.constant 0 : index
    %c0_47 = arith.constant 0 : index
    %92 = vector.load %arg6[%c0_46, %c0_47] : memref<1x128xf32, #tpu.memory_space<vmem>>, vector<1x128xf32>
    %93 = vector.broadcast %92 : vector<1x128xf32> to vector<8x128xf32>
    %94 = arith.addf %91, %93 : vector<8x128xf32>
    %c0_48 = arith.constant 0 : index
    %c0_49 = arith.constant 0 : index
    %95 = vector.load %arg7[%c0_48, %c0_49] : memref<8x128xf32, #tpu.memory_space<vmem>>, vector<8x128xf32>
    tpu.vector_store %arg7[%c0_48, %c0_49], %94 {strides = array<i32>} : memref<8x128xf32, #tpu.memory_space<vmem>>, vector<8x128xf32>,
    return
  }
}

</mosaic_0001>

<llo_original>
// kernel: tpu_custom_call.1
$region0: #{tpu_custom_call.1}
  #allocation0 [shape = 'u32[]', space=smem, size = 0x4, offset = 0x4, fixed_abs, tag = 'smem constant byte address 0x4 - core index']
  #allocation1 [shape = 'u32[144,128]{1,0:T(1,128)}', space=vmem, size = 0x12000, scoped, tag = 'internal scratch']
  %s0 = inlined_call_operand.hbm [shape: f32[8,128], index: 0, kind: input, shape index: {}]
  %s1 = inlined_call_operand.hbm [shape: f32[2,8,128], index: 1, kind: input, shape index: {}]
  %s2 = inlined_call_operand.hbm [shape: f32[2,8,128], index: 2, kind: input, shape index: {}]
  %s3 = inlined_call_operand.hbm [shape: bf16[2,256,512], index: 3, kind: input, shape index: {}]
  %s4 = inlined_call_operand.vmem [shape: f32[2,1,512], index: 4, kind: input, shape index: {}]
  %s5 = inlined_call_operand.hbm [shape: bf16[128,128], index: 5, kind: input, shape index: {}]
  %s6 = inlined_call_operand.vmem [shape: f32[1,128], index: 6, kind: input, shape index: {}]
  %s7 = inlined_call_operand.hbm [shape: f32[8,128], index: 7, kind: output, shape index: {0}]
  %s8 = inlined_call_operand.hbm [shape: f32[2,8,128], index: 8, kind: output, shape index: {1}]
  %s9 = inlined_call_operand.hbm [shape: f32[2,8,128], index: 9, kind: output, shape index: {2}]
  %10 = xla_tuple %s7, %s8, %s9
  %s11 = sld [smem:[#allocation0]]
  $region74: #{tpu_custom_call.1} parent=0
    _
  %s13 = ssub.s32 1, %s11
  %s14 = scalar_select 0, %s13, %s11
  $region1: #{tpu_custom_call.1} parent=0
    #allocation2 [shape = 'u8[4096]{0}', space=vmem, size = 0x1000, scoped, tag = 'input window, operand 0, single buffered']
    #allocation3 [shape = 's32[1]{0}', space=sflag, size = 0x4, scoped, tag = 'scoped memory for tpu_custom_call.1']
    #allocation4 [shape = 's32[1]{0}', space=sflag, size = 0x4, scoped, tag = 'scoped memory for tpu_custom_call.1']
    #allocation5 [shape = 'u8[8192]{0}', space=vmem, size = 0x2000, scoped, tag = 'input window, operand 1, single buffered']
    #allocation6 [shape = 's32[1]{0}', space=sflag, size = 0x4, scoped, tag = 'scoped memory for tpu_custom_call.1']
    #allocation7 [shape = 'u8[8192]{0}', space=vmem, size = 0x2000, scoped, tag = 'input window, operand 2, single buffered']
    #allocation8 [shape = 'u8[524288]{0}', space=vmem, size = 0x80000, scoped, tag = 'input window, operand 3, single buffered']
    #allocation9 [shape = 's32[1]{0}', space=sflag, size = 0x4, scoped, tag = 'scoped memory for tpu_custom_call.1']
    #allocation10 [shape = 'u8[32768]{0}', space=vmem, size = 0x8000, scoped, tag = 'input window, operand 5, single buffered']
    #allocation11 [shape = 'u8[4096]{0}', space=vmem, size = 0x1000, scoped, tag = 'output window, operand 0, single buffered']
    #allocation12 [shape = 'u8[8192]{0}', space=vmem, size = 0x2000, scoped, tag = 'output window, operand 1, single buffered']
    #allocation13 [shape = 's32[1]{0}', space=sflag, size = 0x4, scoped, tag = 'scoped memory for tpu_custom_call.1']
    #allocation14 [shape = 'u8[8192]{0}', space=vmem, size = 0x2000, scoped, tag = 'output window, operand 2, single buffered']
    %15 = vsyncpa [#allocation3], 0
    %16 = vsyncpa [#allocation6], 0
    %17 = vsyncpa [#allocation9], 0
    %18 = vsyncpa [#allocation4], 0
    %19 = vsyncpa [#allocation13], 0
    // Predicated region
    $region2: #{tpu_custom_call.1} parent=1 // pred_check
      _
    $region3: #{tpu_custom_call.1} parent=1 // pred_check_branch
      %21 = sbr.rel (0) target = $region5
    $region4: #{tpu_custom_call.1} parent=1 // pred_region
      %s23 = ssub.s32 128, 128
      %24 = vsyncadd [#allocation3], %s23
      %s26 = sshll.u32 [#allocation2], 4
      %s27 = int_to_ptr.vmem [resolvable:$true] %s26
      %29 = dma.hbm_to_vmem [thread:$0]  %s0, 128, %s27, [#allocation3]
    $region5: #{tpu_custom_call.1} parent=1 // pred_fallthru
      _
    // Predicated region
    $region6: #{tpu_custom_call.1} parent=1 // pred_check
      _
    $region7: #{tpu_custom_call.1} parent=1 // pred_check_branch
      %31 = sbr.rel (0) target = $region9
    $region8: #{tpu_custom_call.1} parent=1 // pred_region
      %s33 = ssub.s32 256, 256
      %34 = vsyncadd [#allocation6], %s33
      %s35 = sshll.u32 [#allocation5], 4
      %s36 = int_to_ptr.vmem [resolvable:$true] %s35
      %41 = dma.hbm_to_vmem [thread:$0]  %s1, 256, %s36, [#allocation6], 128, 128, 8
    $region9: #{tpu_custom_call.1} parent=1 // pred_fallthru
      _
    // Predicated region
    $region10: #{tpu_custom_call.1} parent=1 // pred_check
      _
    $region11: #{tpu_custom_call.1} parent=1 // pred_check_branch
      %43 = sbr.rel (0) target = $region13
    $region12: #{tpu_custom_call.1} parent=1 // pred_region
      %s45 = ssub.s32 256, 256
      %46 = vsyncadd [#allocation6], %s45
      %s47 = sshll.u32 [#allocation7], 4
      %s48 = int_to_ptr.vmem [resolvable:$true] %s47
      %53 = dma.hbm_to_vmem [thread:$0]  %s2, 256, %s48, [#allocation6], 128, 128, 8
    $region13: #{tpu_custom_call.1} parent=1 // pred_fallthru
      _
    // Predicated region
    $region14: #{tpu_custom_call.1} parent=1 // pred_check
      _
    $region15: #{tpu_custom_call.1} parent=1 // pred_check_branch
      %55 = sbr.rel (0) target = $region17
    $region16: #{tpu_custom_call.1} parent=1 // pred_region
      %s57 = ssub.s32 16384, 16384
      %58 = vsyncadd [#allocation9], %s57
      %s59 = sshll.u32 [#allocation8], 4
      %s60 = int_to_ptr.vmem [resolvable:$true] %s59
      %65 = dma.hbm_to_vmem [thread:$0]  %s3, 16384, %s60, [#allocation9], 256, 256, 16
    $region17: #{tpu_custom_call.1} parent=1 // pred_fallthru
      _
    // Predicated region
    $region18: #{tpu_custom_call.1} parent=1 // pred_check
      _
    $region19: #{tpu_custom_call.1} parent=1 // pred_check_branch
      %67 = sbr.rel (0) target = $region21
    $region20: #{tpu_custom_call.1} parent=1 // pred_region
      _
    $region21: #{tpu_custom_call.1} parent=1 // pred_fallthru
      _
    // Predicated region
    $region22: #{tpu_custom_call.1} parent=1 // pred_check
      _
    $region23: #{tpu_custom_call.1} parent=1 // pred_check_branch
      %69 = sbr.rel (0) target = $region25
    $region24: #{tpu_custom_call.1} parent=1 // pred_region
      %s71 = ssub.s32 1024, 1024
      %72 = vsyncadd [#allocation9], %s71
      %s73 = sshll.u32 [#allocation10], 4
      %s74 = int_to_ptr.vmem [resolvable:$true] %s73
      %79 = dma.hbm_to_vmem [thread:$0]  %s5, 1024, %s74, [#allocation9], 64, 64, 4
    $region25: #{tpu_custom_call.1} parent=1 // pred_fallthru
      _
    // Predicated region
    $region26: #{tpu_custom_call.1} parent=1 // pred_check
      _
    $region27: #{tpu_custom_call.1} parent=1 // pred_check_branch
      %81 = sbr.rel (0) target = $region29
    $region28: #{tpu_custom_call.1} parent=1 // pred_region
      _
    $region29: #{tpu_custom_call.1} parent=1 // pred_fallthru
      _
    // Predicated region
    $region30: #{tpu_custom_call.1} parent=1 // pred_check
      _
    $region31: #{tpu_custom_call.1} parent=1 // pred_check_branch
      %83 = sbr.rel (0) target = $region33
    $region32: #{tpu_custom_call.1} parent=1 // pred_region
      %84 = dma.done [#allocation3], 128
    $region33: #{tpu_custom_call.1} parent=1 // pred_fallthru
      _
    // Predicated region
    $region34: #{tpu_custom_call.1} parent=1 // pred_check
      _
    $region35: #{tpu_custom_call.1} parent=1 // pred_check_branch
      %86 = sbr.rel (0) target = $region37
    $region36: #{tpu_custom_call.1} parent=1 // pred_region
      %87 = dma.done [#allocation6], 256
    $region37: #{tpu_custom_call.1} parent=1 // pred_fallthru
      _
    // Predicated region
    $region38: #{tpu_custom_call.1} parent=1 // pred_check
      _
    $region39: #{tpu_custom_call.1} parent=1 // pred_check_branch
      %89 = sbr.rel (0) target = $region41
    $region40: #{tpu_custom_call.1} parent=1 // pred_region
      %90 = dma.done [#allocation6], 256
    $region41: #{tpu_custom_call.1} parent=1 // pred_fallthru
      _
    // Predicated region
    $region42: #{tpu_custom_call.1} parent=1 // pred_check
      _
    $region43: #{tpu_custom_call.1} parent=1 // pred_check_branch
      %92 = sbr.rel (0) target = $region45
    $region44: #{tpu_custom_call.1} parent=1 // pred_region
      %93 = dma.done [#allocation9], 16384
    $region45: #{tpu_custom_call.1} parent=1 // pred_fallthru
      _
    // Predicated region
    $region46: #{tpu_custom_call.1} parent=1 // pred_check
      _
    $region47: #{tpu_custom_call.1} parent=1 // pred_check_branch
      %95 = sbr.rel (0) target = $region49
    $region48: #{tpu_custom_call.1} parent=1 // pred_region
      %96 = dma.done [#allocation9], 1024
    $region49: #{tpu_custom_call.1} parent=1 // pred_fallthru
      _
    %v98 = vld [vmem:[#allocation2] sm:$0xff]
    %v99 = vld [vmem:[#allocation5] sm:$0xff]
    %v100 = vld [vmem:[#allocation7] sm:$0xff]
    %v101 = vld [vmem:[#allocation8] sm:$0xff]
    %v102 = vld [vmem:[#allocation8 + $0x8] sm:$0xff]
    %v103 = vld [vmem:[#allocation8 + $0x10] sm:$0xff]
    %v104 = vld [vmem:[#allocation8 + $0x18] sm:$0xff]
    %v105 = vld [vmem:[#allocation8 + $0x20] sm:$0xff]
    %v106 = vld [vmem:[#allocation8 + $0x28] sm:$0xff]
    %v107 = vld [vmem:[#allocation8 + $0x30] sm:$0xff]
    %v108 = vld [vmem:[#allocation8 + $0x38] sm:$0xff]
    %v109 = vld [vmem:[#allocation8 + $0x40] sm:$0xff]
    %v110 = vld [vmem:[#allocation8 + $0x48] sm:$0xff]
    %v111 = vld [vmem:[#allocation8 + $0x50] sm:$0xff]
    %v112 = vld [vmem:[#allocation8 + $0x58] sm:$0xff]
    %v113 = vld [vmem:[#allocation8 + $0x60] sm:$0xff]
    %v114 = vld [vmem:[#allocation8 + $0x68] sm:$0xff]
    %v115 = vld [vmem:[#allocation8 + $0x70] sm:$0xff]
    %v116 = vld [vmem:[#allocation8 + $0x78] sm:$0xff]
    %v117 = vld [vmem:[#allocation8 + $0x80] sm:$0xff]
    %v118 = vld [vmem:[#allocation8 + $0x88] sm:$0xff]
    %v119 = vld [vmem:[#allocation8 + $0x90] sm:$0xff]
    %v120 = vld [vmem:[#allocation8 + $0x98] sm:$0xff]
    %v121 = vld [vmem:[#allocation8 + $0xa0] sm:$0xff]
    %v122 = vld [vmem:[#allocation8 + $0xa8] sm:$0xff]
    %v123 = vld [vmem:[#allocation8 + $0xb0] sm:$0xff]
    %v124 = vld [vmem:[#allocation8 + $0xb8] sm:$0xff]
    %v125 = vld [vmem:[#allocation8 + $0xc0] sm:$0xff]
    %v126 = vld [vmem:[#allocation8 + $0xc8] sm:$0xff]
    %v127 = vld [vmem:[#allocation8 + $0xd0] sm:$0xff]
    %v128 = vld [vmem:[#allocation8 + $0xd8] sm:$0xff]
    %v129 = vld [vmem:[#allocation8 + $0xe0] sm:$0xff]
    %v130 = vld [vmem:[#allocation8 + $0xe8] sm:$0xff]
    %v131 = vld [vmem:[#allocation8 + $0xf0] sm:$0xff]
    %v132 = vld [vmem:[#allocation8 + $0xf8] sm:$0xff]
    %v133 = vld [vmem:[#allocation8 + $0x100] sm:$0xff]
    %v134 = vld [vmem:[#allocation8 + $0x108] sm:$0xff]
    %v135 = vld [vmem:[#allocation8 + $0x110] sm:$0xff]
    %v136 = vld [vmem:[#allocation8 + $0x118] sm:$0xff]
    %v137 = vld [vmem:[#allocation8 + $0x120] sm:$0xff]
    %v138 = vld [vmem:[#allocation8 + $0x128] sm:$0xff]
    %v139 = vld [vmem:[#allocation8 + $0x130] sm:$0xff]
    %v140 = vld [vmem:[#allocation8 + $0x138] sm:$0xff]
    %v141 = vld [vmem:[#allocation8 + $0x140] sm:$0xff]
    %v142 = vld [vmem:[#allocation8 + $0x148] sm:$0xff]
    %v143 = vld [vmem:[#allocation8 + $0x150] sm:$0xff]
    %v144 = vld [vmem:[#allocation8 + $0x158] sm:$0xff]
    %v145 = vld [vmem:[#allocation8 + $0x160] sm:$0xff]
    %v146 = vld [vmem:[#allocation8 + $0x168] sm:$0xff]
    %v147 = vld [vmem:[#allocation8 + $0x170] sm:$0xff]
    %v148 = vld [vmem:[#allocation8 + $0x178] sm:$0xff]
    %v149 = vld [vmem:[#allocation8 + $0x180] sm:$0xff]
    %v150 = vld [vmem:[#allocation8 + $0x188] sm:$0xff]
    %v151 = vld [vmem:[#allocation8 + $0x190] sm:$0xff]
    %v152 = vld [vmem:[#allocation8 + $0x198] sm:$0xff]
    %v153 = vld [vmem:[#allocation8 + $0x1a0] sm:$0xff]
    %v154 = vld [vmem:[#allocation8 + $0x1a8] sm:$0xff]
    %v155 = vld [vmem:[#allocation8 + $0x1b0] sm:$0xff]
    %v156 = vld [vmem:[#allocation8 + $0x1b8] sm:$0xff]
    %v157 = vld [vmem:[#allocation8 + $0x1c0] sm:$0xff]
    %v158 = vld [vmem:[#allocation8 + $0x1c8] sm:$0xff]
    %v159 = vld [vmem:[#allocation8 + $0x1d0] sm:$0xff]
    %v160 = vld [vmem:[#allocation8 + $0x1d8] sm:$0xff]
    %v161 = vld [vmem:[#allocation8 + $0x1e0] sm:$0xff]
    %v162 = vld [vmem:[#allocation8 + $0x1e8] sm:$0xff]
    %v163 = vld [vmem:[#allocation8 + $0x1f0] sm:$0xff]
    %v164 = vld [vmem:[#allocation8 + $0x1f8] sm:$0xff]
    %v165 = vpack.c.bf16 %v98, %v98
    %v166 = vpack.c.bf16 %v99, %v99
    %v167 = vld [vmem:[%s4] sm:$0xf]
    %v169 = vlaneseq
    %v170 = vshrl.u32 %v169, 7
    %v171 = vsub.s32 0, %v170
    %v172 = vrot.slane %v167, %v171
    %v173 = vlaneseq
    %v174 = vshrl.u32 %v173, 7
    %v175 = vsub.s32 1, %v174
    %v176 = vrot.slane %v167, %v175
    %v177 = vlaneseq
    %v178 = vshrl.u32 %v177, 7
    %v179 = vsub.s32 2, %v178
    %v180 = vrot.slane %v167, %v179
    %v181 = vlaneseq
    %v182 = vshrl.u32 %v181, 7
    %v183 = vsub.s32 3, %v182
    %v184 = vrot.slane %v167, %v183
    %v253 = vunpack.c.l.b16 %v101
    %v254 = vunpack.c.h.b16 %v101
    %v255 = vunpack.c.l.b16 %v102
    %v256 = vunpack.c.h.b16 %v102
    %v257 = vunpack.c.l.b16 %v103
    %v258 = vunpack.c.h.b16 %v103
    %v259 = vunpack.c.l.b16 %v104
    %v260 = vunpack.c.h.b16 %v104
    %v261 = vunpack.c.l.b16 %v105
    %v262 = vunpack.c.h.b16 %v105
    %v263 = vunpack.c.l.b16 %v106
    %v264 = vunpack.c.h.b16 %v106
    %v265 = vunpack.c.l.b16 %v107
    %v266 = vunpack.c.h.b16 %v107
    %v267 = vunpack.c.l.b16 %v108
    %v268 = vunpack.c.h.b16 %v108
    %v269 = vunpack.c.l.b16 %v109
    %v270 = vunpack.c.h.b16 %v109
    %v271 = vunpack.c.l.b16 %v110
    %v272 = vunpack.c.h.b16 %v110
    %v273 = vunpack.c.l.b16 %v111
    %v274 = vunpack.c.h.b16 %v111
    %v275 = vunpack.c.l.b16 %v112
    %v276 = vunpack.c.h.b16 %v112
    %v277 = vunpack.c.l.b16 %v113
    %v278 = vunpack.c.h.b16 %v113
    %v279 = vunpack.c.l.b16 %v114
    %v280 = vunpack.c.h.b16 %v114
    %v281 = vunpack.c.l.b16 %v115
    %v282 = vunpack.c.h.b16 %v115
    %v283 = vunpack.c.l.b16 %v116
    %v284 = vunpack.c.h.b16 %v116
    %v285 = vunpack.c.l.b16 %v117
    %v286 = vunpack.c.h.b16 %v117
    %v287 = vunpack.c.l.b16 %v118
    %v288 = vunpack.c.h.b16 %v118
    %v289 = vunpack.c.l.b16 %v119
    %v290 = vunpack.c.h.b16 %v119
    %v291 = vunpack.c.l.b16 %v120
    %v292 = vunpack.c.h.b16 %v120
    %v293 = vunpack.c.l.b16 %v121
    %v294 = vunpack.c.h.b16 %v121
    %v295 = vunpack.c.l.b16 %v122
    %v296 = vunpack.c.h.b16 %v122
    %v297 = vunpack.c.l.b16 %v123
    %v298 = vunpack.c.h.b16 %v123
    %v299 = vunpack.c.l.b16 %v124
    %v300 = vunpack.c.h.b16 %v124
    %v301 = vunpack.c.l.b16 %v125
    %v302 = vunpack.c.h.b16 %v125
    %v303 = vunpack.c.l.b16 %v126
    %v304 = vunpack.c.h.b16 %v126
    %v305 = vunpack.c.l.b16 %v127
    %v306 = vunpack.c.h.b16 %v127
    %v307 = vunpack.c.l.b16 %v128
    %v308 = vunpack.c.h.b16 %v128
    %v309 = vunpack.c.l.b16 %v129
    %v310 = vunpack.c.h.b16 %v129
    %v311 = vunpack.c.l.b16 %v130
    %v312 = vunpack.c.h.b16 %v130
    %v313 = vunpack.c.l.b16 %v131
    %v314 = vunpack.c.h.b16 %v131
    %v315 = vunpack.c.l.b16 %v132
    %v316 = vunpack.c.h.b16 %v132
    %v317 = vunpack.c.l.b16 %v133
    %v318 = vunpack.c.h.b16 %v133
    %v319 = vunpack.c.l.b16 %v134
    %v320 = vunpack.c.h.b16 %v134
    %v321 = vunpack.c.l.b16 %v135
    %v322 = vunpack.c.h.b16 %v135
    %v323 = vunpack.c.l.b16 %v136
    %v324 = vunpack.c.h.b16 %v136
    %v325 = vunpack.c.l.b16 %v137
    %v326 = vunpack.c.h.b16 %v137
    %v327 = vunpack.c.l.b16 %v138
    %v328 = vunpack.c.h.b16 %v138
    %v329 = vunpack.c.l.b16 %v139
    %v330 = vunpack.c.h.b16 %v139
    %v331 = vunpack.c.l.b16 %v140
    %v332 = vunpack.c.h.b16 %v140
    %v333 = vunpack.c.l.b16 %v141
    %v334 = vunpack.c.h.b16 %v141
    %v335 = vunpack.c.l.b16 %v142
    %v336 = vunpack.c.h.b16 %v142
    %v337 = vunpack.c.l.b16 %v143
    %v338 = vunpack.c.h.b16 %v143
    %v339 = vunpack.c.l.b16 %v144
    %v340 = vunpack.c.h.b16 %v144
    %v341 = vunpack.c.l.b16 %v145
    %v342 = vunpack.c.h.b16 %v145
    %v343 = vunpack.c.l.b16 %v146
    %v344 = vunpack.c.h.b16 %v146
    %v345 = vunpack.c.l.b16 %v147
    %v346 = vunpack.c.h.b16 %v147
    %v347 = vunpack.c.l.b16 %v148
    %v348 = vunpack.c.h.b16 %v148
    %v349 = vunpack.c.l.b16 %v149
    %v350 = vunpack.c.h.b16 %v149
    %v351 = vunpack.c.l.b16 %v150
    %v352 = vunpack.c.h.b16 %v150
    %v353 = vunpack.c.l.b16 %v151
    %v354 = vunpack.c.h.b16 %v151
    %v355 = vunpack.c.l.b16 %v152
    %v356 = vunpack.c.h.b16 %v152
    %v357 = vunpack.c.l.b16 %v153
    %v358 = vunpack.c.h.b16 %v153
    %v359 = vunpack.c.l.b16 %v154
    %v360 = vunpack.c.h.b16 %v154
    %v361 = vunpack.c.l.b16 %v155
    %v362 = vunpack.c.h.b16 %v155
    %v363 = vunpack.c.l.b16 %v156
    %v364 = vunpack.c.h.b16 %v156
    %v365 = vunpack.c.l.b16 %v157
    %v366 = vunpack.c.h.b16 %v157
    %v367 = vunpack.c.l.b16 %v158
    %v368 = vunpack.c.h.b16 %v158
    %v369 = vunpack.c.l.b16 %v159
    %v370 = vunpack.c.h.b16 %v159
    %v371 = vunpack.c.l.b16 %v160
    %v372 = vunpack.c.h.b16 %v160
    %v373 = vunpack.c.l.b16 %v161
    %v374 = vunpack.c.h.b16 %v161
    %v375 = vunpack.c.l.b16 %v162
    %v376 = vunpack.c.h.b16 %v162
    %v377 = vunpack.c.l.b16 %v163
    %v378 = vunpack.c.h.b16 %v163
    %v379 = vunpack.c.l.b16 %v164
    %v380 = vunpack.c.h.b16 %v164
    %v381 = vpack.c.b16 %v257, %v253
    %v382 = vpack.c.b16 %v258, %v254
    %v383 = vpack.c.b16 %v259, %v255
    %v384 = vpack.c.b16 %v260, %v256
    %v385 = vpack.c.b16 %v265, %v261
    %v386 = vpack.c.b16 %v266, %v262
    %v387 = vpack.c.b16 %v267, %v263
    %v388 = vpack.c.b16 %v268, %v264
    %v389 = vpack.c.b16 %v273, %v269
    %v390 = vpack.c.b16 %v274, %v270
    %v391 = vpack.c.b16 %v275, %v271
    %v392 = vpack.c.b16 %v276, %v272
    %v393 = vpack.c.b16 %v281, %v277
    %v394 = vpack.c.b16 %v282, %v278
    %v395 = vpack.c.b16 %v283, %v279
    %v396 = vpack.c.b16 %v284, %v280
    %v397 = vpack.c.b16 %v289, %v285
    %v398 = vpack.c.b16 %v290, %v286
    %v399 = vpack.c.b16 %v291, %v287
    %v400 = vpack.c.b16 %v292, %v288
    %v401 = vpack.c.b16 %v297, %v293
    %v402 = vpack.c.b16 %v298, %v294
    %v403 = vpack.c.b16 %v299, %v295
    %v404 = vpack.c.b16 %v300, %v296
    %v405 = vpack.c.b16 %v305, %v301
    %v406 = vpack.c.b16 %v306, %v302
    %v407 = vpack.c.b16 %v307, %v303
    %v408 = vpack.c.b16 %v308, %v304
    %v409 = vpack.c.b16 %v313, %v309
    %v410 = vpack.c.b16 %v314, %v310
    %v411 = vpack.c.b16 %v315, %v311
    %v412 = vpack.c.b16 %v316, %v312
    %v413 = vpack.c.b16 %v321, %v317
    %v414 = vpack.c.b16 %v322, %v318
    %v415 = vpack.c.b16 %v323, %v319
    %v416 = vpack.c.b16 %v324, %v320
    %v417 = vpack.c.b16 %v329, %v325
    %v418 = vpack.c.b16 %v330, %v326
    %v419 = vpack.c.b16 %v331, %v327
    %v420 = vpack.c.b16 %v332, %v328
    %v421 = vpack.c.b16 %v337, %v333
    %v422 = vpack.c.b16 %v338, %v334
    %v423 = vpack.c.b16 %v339, %v335
    %v424 = vpack.c.b16 %v340, %v336
    %v425 = vpack.c.b16 %v345, %v341
    %v426 = vpack.c.b16 %v346, %v342
    %v427 = vpack.c.b16 %v347, %v343
    %v428 = vpack.c.b16 %v348, %v344
    %v429 = vpack.c.b16 %v353, %v349
    %v430 = vpack.c.b16 %v354, %v350
    %v431 = vpack.c.b16 %v355, %v351
    %v432 = vpack.c.b16 %v356, %v352
    %v433 = vpack.c.b16 %v361, %v357
    %v434 = vpack.c.b16 %v362, %v358
    %v435 = vpack.c.b16 %v363, %v359
    %v436 = vpack.c.b16 %v364, %v360
    %v437 = vpack.c.b16 %v369, %v365
    %v438 = vpack.c.b16 %v370, %v366
    %v439 = vpack.c.b16 %v371, %v367
    %v440 = vpack.c.b16 %v372, %v368
    %v441 = vpack.c.b16 %v377, %v373
    %v442 = vpack.c.b16 %v378, %v374
    %v443 = vpack.c.b16 %v379, %v375
    %v444 = vpack.c.b16 %v380, %v376
    %509 = vmatprep.subr.bf16.mxu0 %v382
    %510 = vmatpush1.bf16.msra.mxu0 %v381
    %511 = vmatprep.subr.bf16.mxu0 %v386
    %512 = vmatpush1.bf16.msra.mxu0 %v385
    %513 = vmatprep.subr.bf16.mxu0 %v390
    %514 = vmatpush1.bf16.msra.mxu0 %v389
    %515 = vmatprep.subr.bf16.mxu0 %v394
    %516 = vmatpush1.bf16.msra.mxu0 %v393
    %517 = vmatprep.subr.bf16.mxu0 %v398
    %518 = vmatpush1.bf16.msra.mxu0 %v397
    %519 = vmatprep.subr.bf16.mxu0 %v402
    %520 = vmatpush1.bf16.msra.mxu0 %v401
    %521 = vmatprep.subr.bf16.mxu0 %v406
    %522 = vmatpush1.bf16.msra.mxu0 %v405
    %523 = vmatprep.subr.bf16.mxu0 %v410
    %524 = vmatpush1.bf16.msra.mxu0 %v409
    %525 = vmatprep.subr.bf16.mxu0 %v414
    %526 = vmatpush1.bf16.msra.mxu0 %v413
    %527 = vmatprep.subr.bf16.mxu0 %v418
    %528 = vmatpush1.bf16.msra.mxu0 %v417
    %529 = vmatprep.subr.bf16.mxu0 %v422
    %530 = vmatpush1.bf16.msra.mxu0 %v421
    %531 = vmatprep.subr.bf16.mxu0 %v426
    %532 = vmatpush1.bf16.msra.mxu0 %v425
    %533 = vmatprep.subr.bf16.mxu0 %v430
    %534 = vmatpush1.bf16.msra.mxu0 %v429
    %535 = vmatprep.subr.bf16.mxu0 %v434
    %536 = vmatpush1.bf16.msra.mxu0 %v433
    %537 = vmatprep.subr.bf16.mxu0 %v438
    %538 = vmatpush1.bf16.msra.mxu0 %v437
    %539 = vmatprep.subr.bf16.mxu0 %v442
    %540 = vmatpush1.bf16.msra.mxu0 %v441
    %541 = vmatprep.mubr.bf16.mxu0 %v166
    %542 = vmatmul.mubr.bf16.gmra.mrb[0].mxu0 %v165
    %v543 = vpop.f32.mrb[0].mxu0
    %v544 = vadd.f32 %v172, %v543
    %v545 = vpop.f32.mrb[0].mxu0
    %v546 = vadd.f32 %v176, %v545
    %v547 = vpop.f32.mrb[0].mxu0
    %v548 = vpop.f32.mrb[0].mxu0
    %549 = vdwg.mxu0
    %550 = vmatprep.subr.bf16.mxu0 %v384
    %551 = vmatpush1.bf16.msra.mxu0 %v383
    %552 = vmatprep.subr.bf16.mxu0 %v388
    %553 = vmatpush1.bf16.msra.mxu0 %v387
    %554 = vmatprep.subr.bf16.mxu0 %v392
    %555 = vmatpush1.bf16.msra.mxu0 %v391
    %556 = vmatprep.subr.bf16.mxu0 %v396
    %557 = vmatpush1.bf16.msra.mxu0 %v395
    %558 = vmatprep.subr.bf16.mxu0 %v400
    %559 = vmatpush1.bf16.msra.mxu0 %v399
    %560 = vmatprep.subr.bf16.mxu0 %v404
    %561 = vmatpush1.bf16.msra.mxu0 %v403
    %562 = vmatprep.subr.bf16.mxu0 %v408
    %563 = vmatpush1.bf16.msra.mxu0 %v407
    %564 = vmatprep.subr.bf16.mxu0 %v412
    %565 = vmatpush1.bf16.msra.mxu0 %v411
    %566 = vmatprep.subr.bf16.mxu0 %v416
    %567 = vmatpush1.bf16.msra.mxu0 %v415
    %568 = vmatprep.subr.bf16.mxu0 %v420
    %569 = vmatpush1.bf16.msra.mxu0 %v419
    %570 = vmatprep.subr.bf16.mxu0 %v424
    %571 = vmatpush1.bf16.msra.mxu0 %v423
    %572 = vmatprep.subr.bf16.mxu0 %v428
    %573 = vmatpush1.bf16.msra.mxu0 %v427
    %574 = vmatprep.subr.bf16.mxu0 %v432
    %575 = vmatpush1.bf16.msra.mxu0 %v431
    %576 = vmatprep.subr.bf16.mxu0 %v436
    %577 = vmatpush1.bf16.msra.mxu0 %v435
    %578 = vmatprep.subr.bf16.mxu0 %v440
    %579 = vmatpush1.bf16.msra.mxu0 %v439
    %580 = vmatprep.subr.bf16.mxu0 %v444
    %581 = vmatpush1.bf16.msra.mxu0 %v443
    %582 = vmatprep.mubr.bf16.mxu0 %v166
    %583 = vmatmul.mubr.bf16.gmra.mrb[0].mxu0 %v165
    %v584 = vpop.f32.mrb[0].mxu0
    %v585 = vadd.f32 %v180, %v584
    %v586 = vpop.f32.mrb[0].mxu0
    %v587 = vadd.f32 %v184, %v586
    %v588 = vpop.f32.mrb[0].mxu0
    %v589 = vpop.f32.mrb[0].mxu0
    %590 = vdwg.mxu0
    %v591 = vxor.u32 %v544, 2147483648
    %v592 = vmul.f32 %v591, 1.442695
    %v593 = vpow.pop %v592
    %v594 = vadd.f32 %v593, 1.0
    %v595 = vrcp.pop %v594
    %v596 = vmul.f32 1.0, %v595
    %v597 = vxor.u32 %v546, 2147483648
    %v598 = vmul.f32 %v597, 1.442695
    %v599 = vpow.pop %v598
    %v600 = vadd.f32 %v599, 1.0
    %v601 = vrcp.pop %v600
    %v602 = vmul.f32 1.0, %v601
    %v603 = vtanh.pop %v585
    %v604 = vxor.u32 %v587, 2147483648
    %v605 = vmul.f32 %v604, 1.442695
    %v606 = vpow.pop %v605
    %v607 = vadd.f32 %v606, 1.0
    %v608 = vrcp.pop %v607
    %v609 = vmul.f32 1.0, %v608
    %v610 = vmul.f32 %v602, %v100
    %v611 = vmul.f32 %v596, %v603
    %v612 = vadd.f32 %v610, %v611
    %v613 = vtanh.pop %v612
    %v614 = vmul.f32 %v609, %v613
    %615 = vst [vmem:[#allocation14] sm:$0xff] %v612
    %616 = vst [vmem:[#allocation12] sm:$0xff] %v614
    %s617 = scalar_lea.vmem [#allocation5], 8
    %v618 = vld [vmem:[%s617] sm:$0xff]
    %s619 = scalar_lea.vmem [#allocation7], 8
    %v620 = vld [vmem:[%s619] sm:$0xff]
    %s621 = scalar_lea.vmem [#allocation8], 512
    %v622 = vld [vmem:[%s621] sm:$0xff]
    %v623 = vld [vmem:[%s621 + $0x8] sm:$0xff]
    %v624 = vld [vmem:[%s621 + $0x10] sm:$0xff]
    %v625 = vld [vmem:[%s621 + $0x18] sm:$0xff]
    %v626 = vld [vmem:[%s621 + $0x20] sm:$0xff]
    %v627 = vld [vmem:[%s621 + $0x28] sm:$0xff]
    %v628 = vld [vmem:[%s621 + $0x30] sm:$0xff]
    %v629 = vld [vmem:[%s621 + $0x38] sm:$0xff]
    %v630 = vld [vmem:[%s621 + $0x40] sm:$0xff]
    %v631 = vld [vmem:[%s621 + $0x48] sm:$0xff]
    %v632 = vld [vmem:[%s621 + $0x50] sm:$0xff]
    %v633 = vld [vmem:[%s621 + $0x58] sm:$0xff]
    %v634 = vld [vmem:[%s621 + $0x60] sm:$0xff]
    %v635 = vld [vmem:[%s621 + $0x68] sm:$0xff]
    %v636 = vld [vmem:[%s621 + $0x70] sm:$0xff]
    %v637 = vld [vmem:[%s621 + $0x78] sm:$0xff]
    %v638 = vld [vmem:[%s621 + $0x80] sm:$0xff]
    %v639 = vld [vmem:[%s621 + $0x88] sm:$0xff]
    %v640 = vld [vmem:[%s621 + $0x90] sm:$0xff]
    %v641 = vld [vmem:[%s621 + $0x98] sm:$0xff]
    %v642 = vld [vmem:[%s621 + $0xa0] sm:$0xff]
    %v643 = vld [vmem:[%s621 + $0xa8] sm:$0xff]
    %v644 = vld [vmem:[%s621 + $0xb0] sm:$0xff]
    %v645 = vld [vmem:[%s621 + $0xb8] sm:$0xff]
    %v646 = vld [vmem:[%s621 + $0xc0] sm:$0xff]
    %v647 = vld [vmem:[%s621 + $0xc8] sm:$0xff]
    %v648 = vld [vmem:[%s621 + $0xd0] sm:$0xff]
    %v649 = vld [vmem:[%s621 + $0xd8] sm:$0xff]
    %v650 = vld [vmem:[%s621 + $0xe0] sm:$0xff]
    %v651 = vld [vmem:[%s621 + $0xe8] sm:$0xff]
    %v652 = vld [vmem:[%s621 + $0xf0] sm:$0xff]
    %v653 = vld [vmem:[%s621 + $0xf8] sm:$0xff]
    %v654 = vld [vmem:[%s621 + $0x100] sm:$0xff]
    %v655 = vld [vmem:[%s621 + $0x108] sm:$0xff]
    %v656 = vld [vmem:[%s621 + $0x110] sm:$0xff]
    %v657 = vld [vmem:[%s621 + $0x118] sm:$0xff]
    %v658 = vld [vmem:[%s621 + $0x120] sm:$0xff]
    %v659 = vld [vmem:[%s621 + $0x128] sm:$0xff]
    %v660 = vld [vmem:[%s621 + $0x130] sm:$0xff]
    %v661 = vld [vmem:[%s621 + $0x138] sm:$0xff]
    %v662 = vld [vmem:[%s621 + $0x140] sm:$0xff]
    %v663 = vld [vmem:[%s621 + $0x148] sm:$0xff]
    %v664 = vld [vmem:[%s621 + $0x150] sm:$0xff]
    %v665 = vld [vmem:[%s621 + $0x158] sm:$0xff]
    %v666 = vld [vmem:[%s621 + $0x160] sm:$0xff]
    %v667 = vld [vmem:[%s621 + $0x168] sm:$0xff]
    %v668 = vld [vmem:[%s621 + $0x170] sm:$0xff]
    %v669 = vld [vmem:[%s621 + $0x178] sm:$0xff]
    %v670 = vld [vmem:[%s621 + $0x180] sm:$0xff]
    %v671 = vld [vmem:[%s621 + $0x188] sm:$0xff]
    %v672 = vld [vmem:[%s621 + $0x190] sm:$0xff]
    %v673 = vld [vmem:[%s621 + $0x198] sm:$0xff]
    %v674 = vld [vmem:[%s621 + $0x1a0] sm:$0xff]
    %v675 = vld [vmem:[%s621 + $0x1a8] sm:$0xff]
    %v676 = vld [vmem:[%s621 + $0x1b0] sm:$0xff]
    %v677 = vld [vmem:[%s621 + $0x1b8] sm:$0xff]
    %v678 = vld [vmem:[%s621 + $0x1c0] sm:$0xff]
    %v679 = vld [vmem:[%s621 + $0x1c8] sm:$0xff]
    %v680 = vld [vmem:[%s621 + $0x1d0] sm:$0xff]
    %v681 = vld [vmem:[%s621 + $0x1d8] sm:$0xff]
    %v682 = vld [vmem:[%s621 + $0x1e0] sm:$0xff]
    %v683 = vld [vmem:[%s621 + $0x1e8] sm:$0xff]
    %v684 = vld [vmem:[%s621 + $0x1f0] sm:$0xff]
    %v685 = vld [vmem:[%s621 + $0x1f8] sm:$0xff]
    %v686 = vpack.c.bf16 %v614, %v614
    %v687 = vpack.c.bf16 %v618, %v618
    %s688 = scalar_lea.vmem %s4, 4
    %v689 = vld [vmem:[%s688] sm:$0xf]
    %v691 = vlaneseq
    %v692 = vshrl.u32 %v691, 7
    %v693 = vsub.s32 0, %v692
    %v694 = vrot.slane %v689, %v693
    %v695 = vlaneseq
    %v696 = vshrl.u32 %v695, 7
    %v697 = vsub.s32 1, %v696
    %v698 = vrot.slane %v689, %v697
    %v699 = vlaneseq
    %v700 = vshrl.u32 %v699, 7
    %v701 = vsub.s32 2, %v700
    %v702 = vrot.slane %v689, %v701
    %v703 = vlaneseq
    %v704 = vshrl.u32 %v703, 7
    %v705 = vsub.s32 3, %v704
    %v706 = vrot.slane %v689, %v705
    %v775 = vunpack.c.l.b16 %v622
    %v776 = vunpack.c.h.b16 %v622
    %v777 = vunpack.c.l.b16 %v623
    %v778 = vunpack.c.h.b16 %v623
    %v779 = vunpack.c.l.b16 %v624
    %v780 = vunpack.c.h.b16 %v624
    %v781 = vunpack.c.l.b16 %v625
    %v782 = vunpack.c.h.b16 %v625
    %v783 = vunpack.c.l.b16 %v626
    %v784 = vunpack.c.h.b16 %v626
    %v785 = vunpack.c.l.b16 %v627
    %v786 = vunpack.c.h.b16 %v627
    %v787 = vunpack.c.l.b16 %v628
    %v788 = vunpack.c.h.b16 %v628
    %v789 = vunpack.c.l.b16 %v629
    %v790 = vunpack.c.h.b16 %v629
    %v791 = vunpack.c.l.b16 %v630
    %v792 = vunpack.c.h.b16 %v630
    %v793 = vunpack.c.l.b16 %v631
    %v794 = vunpack.c.h.b16 %v631
    %v795 = vunpack.c.l.b16 %v632
    %v796 = vunpack.c.h.b16 %v632
    %v797 = vunpack.c.l.b16 %v633
    %v798 = vunpack.c.h.b16 %v633
    %v799 = vunpack.c.l.b16 %v634
    %v800 = vunpack.c.h.b16 %v634
    %v801 = vunpack.c.l.b16 %v635
    %v802 = vunpack.c.h.b16 %v635
    %v803 = vunpack.c.l.b16 %v636
    %v804 = vunpack.c.h.b16 %v636
    %v805 = vunpack.c.l.b16 %v637
    %v806 = vunpack.c.h.b16 %v637
    %v807 = vunpack.c.l.b16 %v638
    %v808 = vunpack.c.h.b16 %v638
    %v809 = vunpack.c.l.b16 %v639
    %v810 = vunpack.c.h.b16 %v639
    %v811 = vunpack.c.l.b16 %v640
    %v812 = vunpack.c.h.b16 %v640
    %v813 = vunpack.c.l.b16 %v641
    %v814 = vunpack.c.h.b16 %v641
    %v815 = vunpack.c.l.b16 %v642
    %v816 = vunpack.c.h.b16 %v642
    %v817 = vunpack.c.l.b16 %v643
    %v818 = vunpack.c.h.b16 %v643
    %v819 = vunpack.c.l.b16 %v644
    %v820 = vunpack.c.h.b16 %v644
    %v821 = vunpack.c.l.b16 %v645
    %v822 = vunpack.c.h.b16 %v645
    %v823 = vunpack.c.l.b16 %v646
    %v824 = vunpack.c.h.b16 %v646
    %v825 = vunpack.c.l.b16 %v647
    %v826 = vunpack.c.h.b16 %v647
    %v827 = vunpack.c.l.b16 %v648
    %v828 = vunpack.c.h.b16 %v648
    %v829 = vunpack.c.l.b16 %v649
    %v830 = vunpack.c.h.b16 %v649
    %v831 = vunpack.c.l.b16 %v650
    %v832 = vunpack.c.h.b16 %v650
    %v833 = vunpack.c.l.b16 %v651
    %v834 = vunpack.c.h.b16 %v651
    %v835 = vunpack.c.l.b16 %v652
    %v836 = vunpack.c.h.b16 %v652
    %v837 = vunpack.c.l.b16 %v653
    %v838 = vunpack.c.h.b16 %v653
    %v839 = vunpack.c.l.b16 %v654
    %v840 = vunpack.c.h.b16 %v654
    %v841 = vunpack.c.l.b16 %v655
    %v842 = vunpack.c.h.b16 %v655
    %v843 = vunpack.c.l.b16 %v656
    %v844 = vunpack.c.h.b16 %v656
    %v845 = vunpack.c.l.b16 %v657
    %v846 = vunpack.c.h.b16 %v657
    %v847 = vunpack.c.l.b16 %v658
    %v848 = vunpack.c.h.b16 %v658
    %v849 = vunpack.c.l.b16 %v659
    %v850 = vunpack.c.h.b16 %v659
    %v851 = vunpack.c.l.b16 %v660
    %v852 = vunpack.c.h.b16 %v660
    %v853 = vunpack.c.l.b16 %v661
    %v854 = vunpack.c.h.b16 %v661
    %v855 = vunpack.c.l.b16 %v662
    %v856 = vunpack.c.h.b16 %v662
    %v857 = vunpack.c.l.b16 %v663
    %v858 = vunpack.c.h.b16 %v663
    %v859 = vunpack.c.l.b16 %v664
    %v860 = vunpack.c.h.b16 %v664
    %v861 = vunpack.c.l.b16 %v665
    %v862 = vunpack.c.h.b16 %v665
    %v863 = vunpack.c.l.b16 %v666
    %v864 = vunpack.c.h.b16 %v666
    %v865 = vunpack.c.l.b16 %v667
    %v866 = vunpack.c.h.b16 %v667
    %v867 = vunpack.c.l.b16 %v668
    %v868 = vunpack.c.h.b16 %v668
    %v869 = vunpack.c.l.b16 %v669
    %v870 = vunpack.c.h.b16 %v669
    %v871 = vunpack.c.l.b16 %v670
    %v872 = vunpack.c.h.b16 %v670
    %v873 = vunpack.c.l.b16 %v671
    %v874 = vunpack.c.h.b16 %v671
    %v875 = vunpack.c.l.b16 %v672
    %v876 = vunpack.c.h.b16 %v672
    %v877 = vunpack.c.l.b16 %v673
    %v878 = vunpack.c.h.b16 %v673
    %v879 = vunpack.c.l.b16 %v674
    %v880 = vunpack.c.h.b16 %v674
    %v881 = vunpack.c.l.b16 %v675
    %v882 = vunpack.c.h.b16 %v675
    %v883 = vunpack.c.l.b16 %v676
    %v884 = vunpack.c.h.b16 %v676
    %v885 = vunpack.c.l.b16 %v677
    %v886 = vunpack.c.h.b16 %v677
    %v887 = vunpack.c.l.b16 %v678
    %v888 = vunpack.c.h.b16 %v678
    %v889 = vunpack.c.l.b16 %v679
    %v890 = vunpack.c.h.b16 %v679
    %v891 = vunpack.c.l.b16 %v680
    %v892 = vunpack.c.h.b16 %v680
    %v893 = vunpack.c.l.b16 %v681
    %v894 = vunpack.c.h.b16 %v681
    %v895 = vunpack.c.l.b16 %v682
    %v896 = vunpack.c.h.b16 %v682
    %v897 = vunpack.c.l.b16 %v683
    %v898 = vunpack.c.h.b16 %v683
    %v899 = vunpack.c.l.b16 %v684
    %v900 = vunpack.c.h.b16 %v684
    %v901 = vunpack.c.l.b16 %v685
    %v902 = vunpack.c.h.b16 %v685
    %v903 = vpack.c.b16 %v779, %v775
    %v904 = vpack.c.b16 %v780, %v776
    %v905 = vpack.c.b16 %v781, %v777
    %v906 = vpack.c.b16 %v782, %v778
    %v907 = vpack.c.b16 %v787, %v783
    %v908 = vpack.c.b16 %v788, %v784
    %v909 = vpack.c.b16 %v789, %v785
    %v910 = vpack.c.b16 %v790, %v786
    %v911 = vpack.c.b16 %v795, %v791
    %v912 = vpack.c.b16 %v796, %v792
    %v913 = vpack.c.b16 %v797, %v793
    %v914 = vpack.c.b16 %v798, %v794
    %v915 = vpack.c.b16 %v803, %v799
    %v916 = vpack.c.b16 %v804, %v800
    %v917 = vpack.c.b16 %v805, %v801
    %v918 = vpack.c.b16 %v806, %v802
    %v919 = vpack.c.b16 %v811, %v807
    %v920 = vpack.c.b16 %v812, %v808
    %v921 = vpack.c.b16 %v813, %v809
    %v922 = vpack.c.b16 %v814, %v810
    %v923 = vpack.c.b16 %v819, %v815
    %v924 = vpack.c.b16 %v820, %v816
    %v925 = vpack.c.b16 %v821, %v817
    %v926 = vpack.c.b16 %v822, %v818
    %v927 = vpack.c.b16 %v827, %v823
    %v928 = vpack.c.b16 %v828, %v824
    %v929 = vpack.c.b16 %v829, %v825
    %v930 = vpack.c.b16 %v830, %v826
    %v931 = vpack.c.b16 %v835, %v831
    %v932 = vpack.c.b16 %v836, %v832
    %v933 = vpack.c.b16 %v837, %v833
    %v934 = vpack.c.b16 %v838, %v834
    %v935 = vpack.c.b16 %v843, %v839
    %v936 = vpack.c.b16 %v844, %v840
    %v937 = vpack.c.b16 %v845, %v841
    %v938 = vpack.c.b16 %v846, %v842
    %v939 = vpack.c.b16 %v851, %v847
    %v940 = vpack.c.b16 %v852, %v848
    %v941 = vpack.c.b16 %v853, %v849
    %v942 = vpack.c.b16 %v854, %v850
    %v943 = vpack.c.b16 %v859, %v855
    %v944 = vpack.c.b16 %v860, %v856
    %v945 = vpack.c.b16 %v861, %v857
    %v946 = vpack.c.b16 %v862, %v858
    %v947 = vpack.c.b16 %v867, %v863
    %v948 = vpack.c.b16 %v868, %v864
    %v949 = vpack.c.b16 %v869, %v865
    %v950 = vpack.c.b16 %v870, %v866
    %v951 = vpack.c.b16 %v875, %v871
    %v952 = vpack.c.b16 %v876, %v872
    %v953 = vpack.c.b16 %v877, %v873
    %v954 = vpack.c.b16 %v878, %v874
    %v955 = vpack.c.b16 %v883, %v879
    %v956 = vpack.c.b16 %v884, %v880
    %v957 = vpack.c.b16 %v885, %v881
    %v958 = vpack.c.b16 %v886, %v882
    %v959 = vpack.c.b16 %v891, %v887
    %v960 = vpack.c.b16 %v892, %v888
    %v961 = vpack.c.b16 %v893, %v889
    %v962 = vpack.c.b16 %v894, %v890
    %v963 = vpack.c.b16 %v899, %v895
    %v964 = vpack.c.b16 %v900, %v896
    %v965 = vpack.c.b16 %v901, %v897
    %v966 = vpack.c.b16 %v902, %v898
    %1031 = vmatprep.subr.bf16.mxu0 %v904
    %1032 = vmatpush1.bf16.msra.mxu0 %v903
    %1033 = vmatprep.subr.bf16.mxu0 %v908
    %1034 = vmatpush1.bf16.msra.mxu0 %v907
    %1035 = vmatprep.subr.bf16.mxu0 %v912
    %1036 = vmatpush1.bf16.msra.mxu0 %v911
    %1037 = vmatprep.subr.bf16.mxu0 %v916
    %1038 = vmatpush1.bf16.msra.mxu0 %v915
    %1039 = vmatprep.subr.bf16.mxu0 %v920
    %1040 = vmatpush1.bf16.msra.mxu0 %v919
    %1041 = vmatprep.subr.bf16.mxu0 %v924
    %1042 = vmatpush1.bf16.msra.mxu0 %v923
    %1043 = vmatprep.subr.bf16.mxu0 %v928
    %1044 = vmatpush1.bf16.msra.mxu0 %v927
    %1045 = vmatprep.subr.bf16.mxu0 %v932
    %1046 = vmatpush1.bf16.msra.mxu0 %v931
    %1047 = vmatprep.subr.bf16.mxu0 %v936
    %1048 = vmatpush1.bf16.msra.mxu0 %v935
    %1049 = vmatprep.subr.bf16.mxu0 %v940
    %1050 = vmatpush1.bf16.msra.mxu0 %v939
    %1051 = vmatprep.subr.bf16.mxu0 %v944
    %1052 = vmatpush1.bf16.msra.mxu0 %v943
    %1053 = vmatprep.subr.bf16.mxu0 %v948
    %1054 = vmatpush1.bf16.msra.mxu0 %v947
    %1055 = vmatprep.subr.bf16.mxu0 %v952
    %1056 = vmatpush1.bf16.msra.mxu0 %v951
    %1057 = vmatprep.subr.bf16.mxu0 %v956
    %1058 = vmatpush1.bf16.msra.mxu0 %v955
    %1059 = vmatprep.subr.bf16.mxu0 %v960
    %1060 = vmatpush1.bf16.msra.mxu0 %v959
    %1061 = vmatprep.subr.bf16.mxu0 %v964
    %1062 = vmatpush1.bf16.msra.mxu0 %v963
    %1063 = vmatprep.mubr.bf16.mxu0 %v687
    %1064 = vmatmul.mubr.bf16.gmra.mrb[0].mxu0 %v686
    %v1065 = vpop.f32.mrb[0].mxu0
    %v1066 = vadd.f32 %v694, %v1065
    %v1067 = vpop.f32.mrb[0].mxu0
    %v1068 = vadd.f32 %v698, %v1067
    %v1069 = vpop.f32.mrb[0].mxu0
    %v1070 = vpop.f32.mrb[0].mxu0
    %1071 = vdwg.mxu0
    %1072 = vmatprep.subr.bf16.mxu0 %v906
    %1073 = vmatpush1.bf16.msra.mxu0 %v905
    %1074 = vmatprep.subr.bf16.mxu0 %v910
    %1075 = vmatpush1.bf16.msra.mxu0 %v909
    %1076 = vmatprep.subr.bf16.mxu0 %v914
    %1077 = vmatpush1.bf16.msra.mxu0 %v913
    %1078 = vmatprep.subr.bf16.mxu0 %v918
    %1079 = vmatpush1.bf16.msra.mxu0 %v917
    %1080 = vmatprep.subr.bf16.mxu0 %v922
    %1081 = vmatpush1.bf16.msra.mxu0 %v921
    %1082 = vmatprep.subr.bf16.mxu0 %v926
    %1083 = vmatpush1.bf16.msra.mxu0 %v925
    %1084 = vmatprep.subr.bf16.mxu0 %v930
    %1085 = vmatpush1.bf16.msra.mxu0 %v929
    %1086 = vmatprep.subr.bf16.mxu0 %v934
    %1087 = vmatpush1.bf16.msra.mxu0 %v933
    %1088 = vmatprep.subr.bf16.mxu0 %v938
    %1089 = vmatpush1.bf16.msra.mxu0 %v937
    %1090 = vmatprep.subr.bf16.mxu0 %v942
    %1091 = vmatpush1.bf16.msra.mxu0 %v941
    %1092 = vmatprep.subr.bf16.mxu0 %v946
    %1093 = vmatpush1.bf16.msra.mxu0 %v945
    %1094 = vmatprep.subr.bf16.mxu0 %v950
    %1095 = vmatpush1.bf16.msra.mxu0 %v949
    %1096 = vmatprep.subr.bf16.mxu0 %v954
    %1097 = vmatpush1.bf16.msra.mxu0 %v953
    %1098 = vmatprep.subr.bf16.mxu0 %v958
    %1099 = vmatpush1.bf16.msra.mxu0 %v957
    %1100 = vmatprep.subr.bf16.mxu0 %v962
    %1101 = vmatpush1.bf16.msra.mxu0 %v961
    %1102 = vmatprep.subr.bf16.mxu0 %v966
    %1103 = vmatpush1.bf16.msra.mxu0 %v965
    %1104 = vmatprep.mubr.bf16.mxu0 %v687
    %1105 = vmatmul.mubr.bf16.gmra.mrb[0].mxu0 %v686
    %v1106 = vpop.f32.mrb[0].mxu0
    %v1107 = vadd.f32 %v702, %v1106
    %v1108 = vpop.f32.mrb[0].mxu0
    %v1109 = vadd.f32 %v706, %v1108
    %v1110 = vpop.f32.mrb[0].mxu0
    %v1111 = vpop.f32.mrb[0].mxu0
    %1112 = vdwg.mxu0
    %v1113 = vxor.u32 %v1066, 2147483648
    %v1114 = vmul.f32 %v1113, 1.442695
    %v1115 = vpow.pop %v1114
    %v1116 = vadd.f32 %v1115, 1.0
    %v1117 = vrcp.pop %v1116
    %v1118 = vmul.f32 1.0, %v1117
    %v1119 = vxor.u32 %v1068, 2147483648
    %v1120 = vmul.f32 %v1119, 1.442695
    %v1121 = vpow.pop %v1120
    %v1122 = vadd.f32 %v1121, 1.0
    %v1123 = vrcp.pop %v1122
    %v1124 = vmul.f32 1.0, %v1123
    %v1125 = vtanh.pop %v1107
    %v1126 = vxor.u32 %v1109, 2147483648
    %v1127 = vmul.f32 %v1126, 1.442695
    %v1128 = vpow.pop %v1127
    %v1129 = vadd.f32 %v1128, 1.0
    %v1130 = vrcp.pop %v1129
    %v1131 = vmul.f32 1.0, %v1130
    %v1132 = vmul.f32 %v1124, %v620
    %v1133 = vmul.f32 %v1118, %v1125
    %v1134 = vadd.f32 %v1132, %v1133
    %v1135 = vtanh.pop %v1134
    %v1136 = vmul.f32 %v1131, %v1135
    %s1137 = scalar_lea.vmem [#allocation14], 8
    %1138 = vst [vmem:[%s1137] sm:$0xff] %v1134
    %s1139 = scalar_lea.vmem [#allocation12], 8
    %1140 = vst [vmem:[%s1139] sm:$0xff] %v1136
    %v1141 = vld [vmem:[#allocation10] sm:$0xf]
    %v1142 = vld [vmem:[#allocation10 + $0x4] sm:$0xf]
    %v1143 = vld [vmem:[#allocation10 + $0x8] sm:$0xf]
    %v1144 = vld [vmem:[#allocation10 + $0xc] sm:$0xf]
    %v1145 = vld [vmem:[#allocation10 + $0x10] sm:$0xf]
    %v1146 = vld [vmem:[#allocation10 + $0x14] sm:$0xf]
    %v1147 = vld [vmem:[#allocation10 + $0x18] sm:$0xf]
    %v1148 = vld [vmem:[#allocation10 + $0x1c] sm:$0xf]
    %v1149 = vld [vmem:[#allocation10 + $0x20] sm:$0xf]
    %v1150 = vld [vmem:[#allocation10 + $0x24] sm:$0xf]
    %v1151 = vld [vmem:[#allocation10 + $0x28] sm:$0xf]
    %v1152 = vld [vmem:[#allocation10 + $0x2c] sm:$0xf]
    %v1153 = vld [vmem:[#allocation10 + $0x30] sm:$0xf]
    %v1154 = vld [vmem:[#allocation10 + $0x34] sm:$0xf]
    %v1155 = vld [vmem:[#allocation10 + $0x38] sm:$0xf]
    %v1156 = vld [vmem:[#allocation10 + $0x3c] sm:$0xf]
    %v1157 = vpack.c.bf16 %v1136, %v1136
    %v1158 = vld [vmem:[%s6] sm:$0x1]
    %v1160 = vlaneseq
    %v1161 = vshrl.u32 %v1160, 7
    %v1162 = vsub.s32 0, %v1161
    %v1163 = vrot.slane %v1158, %v1162
    %v1181 = vunpack.c.l.b16 %v1141
    %v1182 = vunpack.c.l.b16 %v1142
    %v1183 = vunpack.c.l.b16 %v1143
    %v1184 = vunpack.c.l.b16 %v1144
    %v1185 = vunpack.c.l.b16 %v1145
    %v1186 = vunpack.c.l.b16 %v1146
    %v1187 = vunpack.c.l.b16 %v1147
    %v1188 = vunpack.c.l.b16 %v1148
    %v1189 = vunpack.c.l.b16 %v1149
    %v1190 = vunpack.c.l.b16 %v1150
    %v1191 = vunpack.c.l.b16 %v1151
    %v1192 = vunpack.c.l.b16 %v1152
    %v1193 = vunpack.c.l.b16 %v1153
    %v1194 = vunpack.c.l.b16 %v1154
    %v1195 = vunpack.c.l.b16 %v1155
    %v1196 = vunpack.c.l.b16 %v1156
    %v1197 = vpack.c.b16 %v1182, %v1181
    %v1198 = vpack.c.b16 %v1184, %v1183
    %v1199 = vpack.c.b16 %v1186, %v1185
    %v1200 = vpack.c.b16 %v1188, %v1187
    %v1201 = vpack.c.b16 %v1190, %v1189
    %v1202 = vpack.c.b16 %v1192, %v1191
    %v1203 = vpack.c.b16 %v1194, %v1193
    %v1204 = vpack.c.b16 %v1196, %v1195
    %1213 = vmatprep.subr.bf16.mxu0 0
    %1214 = vmatpush1.bf16.msra.mxu0 %v1197
    %1215 = vmatprep.subr.bf16.mxu0 0
    %1216 = vmatpush1.bf16.msra.mxu0 %v1198
    %1217 = vmatprep.subr.bf16.mxu0 0
    %1218 = vmatpush1.bf16.msra.mxu0 %v1199
    %1219 = vmatprep.subr.bf16.mxu0 0
    %1220 = vmatpush1.bf16.msra.mxu0 %v1200
    %1221 = vmatprep.subr.bf16.mxu0 0
    %1222 = vmatpush1.bf16.msra.mxu0 %v1201
    %1223 = vmatprep.subr.bf16.mxu0 0
    %1224 = vmatpush1.bf16.msra.mxu0 %v1202
    %1225 = vmatprep.subr.bf16.mxu0 0
    %1226 = vmatpush1.bf16.msra.mxu0 %v1203
    %1227 = vmatprep.subr.bf16.mxu0 0
    %1228 = vmatpush1.bf16.msra.mxu0 %v1204
    %1229 = vmatprep.subr.bf16.mxu0 0
    %1230 = vmatpush1.bf16.msra.mxu0 0
    %1231 = vmatprep.subr.bf16.mxu0 0
    %1232 = vmatpush1.bf16.msra.mxu0 0
    %1233 = vmatprep.subr.bf16.mxu0 0
    %1234 = vmatpush1.bf16.msra.mxu0 0
    %1235 = vmatprep.subr.bf16.mxu0 0
    %1236 = vmatpush1.bf16.msra.mxu0 0
    %1237 = vmatprep.subr.bf16.mxu0 0
    %1238 = vmatpush1.bf16.msra.mxu0 0
    %1239 = vmatprep.subr.bf16.mxu0 0
    %1240 = vmatpush1.bf16.msra.mxu0 0
    %1241 = vmatprep.subr.bf16.mxu0 0
    %1242 = vmatpush1.bf16.msra.mxu0 0
    %1243 = vmatprep.subr.bf16.mxu0 0
    %1244 = vmatpush1.bf16.msra.mxu0 0
    %1245 = vmatprep.mubr.bf16.mxu0 0
    %1246 = vmatmul.mubr.bf16.gmra.mrb[0].mxu0 %v1157
    %v1247 = vpop.f32.mrb[0].mxu0
    %v1248 = vadd.f32 %v1163, %v1247
    %v1249 = vpop.f32.mrb[0].mxu0
    %v1250 = vpop.f32.mrb[0].mxu0
    %v1251 = vpop.f32.mrb[0].mxu0
    %1252 = vdwg.mxu0
    %1253 = vst [vmem:[#allocation11] sm:$0xff] %v1248
    // Predicated region
    $region50: #{tpu_custom_call.1} parent=1 // pred_check
      _
    $region51: #{tpu_custom_call.1} parent=1 // pred_check_branch
      %1255 = sbr.rel (0) target = $region53
    $region52: #{tpu_custom_call.1} parent=1 // pred_region
      %s1257 = ssub.s32 128, 128
      %1258 = vsyncadd [#allocation4], %s1257
      %s1260 = sshll.u32 [#allocation11], 4
      %s1261 = int_to_ptr.vmem [resolvable:$true] %s1260
      %1263 = dma.vmem_to_hbm [thread:$0]  %s1261, 128, %s7, [#allocation4]
    $region53: #{tpu_custom_call.1} parent=1 // pred_fallthru
      _
    // Predicated region
    $region54: #{tpu_custom_call.1} parent=1 // pred_check
      _
    $region55: #{tpu_custom_call.1} parent=1 // pred_check_branch
      %1265 = sbr.rel (0) target = $region57
    $region56: #{tpu_custom_call.1} parent=1 // pred_region
      %s1267 = ssub.s32 256, 256
      %1268 = vsyncadd [#allocation13], %s1267
      %s1269 = sshll.u32 [#allocation12], 4
      %s1270 = int_to_ptr.vmem [resolvable:$true] %s1269
      %1275 = dma.vmem_to_hbm [thread:$0]  %s1270, 256, %s8, [#allocation13], 128, 128, 8
    $region57: #{tpu_custom_call.1} parent=1 // pred_fallthru
      _
    // Predicated region
    $region58: #{tpu_custom_call.1} parent=1 // pred_check
      _
    $region59: #{tpu_custom_call.1} parent=1 // pred_check_branch
      %1277 = sbr.rel (0) target = $region61
    $region60: #{tpu_custom_call.1} parent=1 // pred_region
      %s1279 = ssub.s32 256, 256
      %1280 = vsyncadd [#allocation13], %s1279
      %s1281 = sshll.u32 [#allocation14], 4
      %s1282 = int_to_ptr.vmem [resolvable:$true] %s1281
      %1287 = dma.vmem_to_hbm [thread:$0]  %s1282, 256, %s9, [#allocation13], 128, 128, 8
    $region61: #{tpu_custom_call.1} parent=1 // pred_fallthru
      _
    // Predicated region
    $region62: #{tpu_custom_call.1} parent=1 // pred_check
      _
    $region63: #{tpu_custom_call.1} parent=1 // pred_check_branch
      %1289 = sbr.rel (0) target = $region65
    $region64: #{tpu_custom_call.1} parent=1 // pred_region
      %1290 = dma.done [#allocation4], 128
    $region65: #{tpu_custom_call.1} parent=1 // pred_fallthru
      _
    // Predicated region
    $region66: #{tpu_custom_call.1} parent=1 // pred_check
      _
    $region67: #{tpu_custom_call.1} parent=1 // pred_check_branch
      %1292 = sbr.rel (0) target = $region69
    $region68: #{tpu_custom_call.1} parent=1 // pred_region
      %1293 = dma.done [#allocation13], 256
    $region69: #{tpu_custom_call.1} parent=1 // pred_fallthru
      _
    // Predicated region
    $region70: #{tpu_custom_call.1} parent=1 // pred_check
      _
    $region71: #{tpu_custom_call.1} parent=1 // pred_check_branch
      %1295 = sbr.rel (0) target = $region73
    $region72: #{tpu_custom_call.1} parent=1 // pred_region
      %1296 = dma.done [#allocation13], 256
    $region73: #{tpu_custom_call.1} parent=1 // pred_fallthru
      _
    %1297 = vsyncpa [#allocation3], 1
    %1298 = vsyncpa [#allocation6], 1
    %1299 = vsyncpa [#allocation9], 1
    %1300 = vsyncpa [#allocation4], 1
    %1301 = vsyncpa [#allocation13], 1

</llo_original>
